<compile_context>
chip_gen: v7x
topology: tpu7x:2x2x1
jax: 0.10.0
libtpu: 0.0.40
codegen_flags: <defaults>
</compile_context>

<pallas_src>
import functools

import jax
import jax.numpy as jnp
from jax import lax
from jax.experimental import pallas as pl
from jax.experimental.pallas import tpu as pltpu

_LANES = 128
_SUBLANES = 8
_TARGET_ROW_TILE = 4096   # rows per grid step -> 2 MiB per f32 input tile
_CHUNK_ROWS = 256         # in-kernel sub-chunk (bounds vreg live ranges)


def _num_tensorcores() -> int:
    """Best-effort TensorCore count (v7x has 2/chip). Falls back to 2, which is
    a harmless no-op extra grid axis on single-TC v5e/v6e."""
    try:
        info = pltpu.get_tpu_info()
        for name in ("num_cores", "core_count", "num_tensorcores",
                     "tensorcore_count", "num_tensorcores_per_chip"):
            v = getattr(info, name, None)
            if isinstance(v, int) and v > 0:
                return v
    except Exception:
        pass
    dev = jax.devices()[0]
    for name in ("num_cores", "core_count"):
        v = getattr(dev, name, None)
        if isinstance(v, int) and v > 0:
            return v
    return 2


def _mse_kernel(yt_ref, yp_ref, o_ref, *, chunk_rows, n_chunks, acc_rows):
    i = pl.program_id(1)

    @pl.when(i == 0)
    def _():
        o_ref[...] = jnp.zeros_like(o_ref)

    def body(c, acc):
        r0 = pl.multiple_of(c * chunk_rows, chunk_rows)
        # Cast in-kernel (inputs travel HBM->VMEM in native dtype).
        d = (yt_ref[pl.ds(r0, chunk_rows), :].astype(jnp.float32)
             - yp_ref[pl.ds(r0, chunk_rows), :].astype(jnp.float32))
        # Fold contiguous (acc_rows,128) slabs: short, mostly independent
        # add chains -> VALU latency stays hidden under the HBM stream.
        return acc + jnp.sum((d * d).reshape(-1, acc_rows, _LANES), axis=0)

    part = lax.fori_loop(0, n_chunks, body,
                         jnp.zeros((acc_rows, _LANES), jnp.float32),
                         unroll=True)
    # Output block is resident across the reduction axis: accumulate in place.
    o_ref[...] += part


def mse_pallas(y_true: jax.Array, y_pred: jax.Array) -> jax.Array:
    """Returns scalar float32: mean((y_true - y_pred)**2)."""
    assert y_true.shape == y_pred.shape
    n = int(y_true.size)
    assert n > 0

    yt = jnp.ravel(y_true)
    yp = jnp.ravel(y_pred)

    # ---- Static (trace-time) tiling arithmetic. ----
    min_elems = _SUBLANES * _LANES
    if n < min_elems:
        # Tiny input: pad BOTH inputs with equal values (zero squared-diff
        # contribution) so the kernel still gets one full (8,128) tile.
        pad = min_elems - n
        yt = jnp.concatenate([yt, jnp.zeros((pad,), yt.dtype)])
        yp = jnp.concatenate([yp, jnp.zeros((pad,), yp.dtype)])
    flat_size = int(yt.size)

    rows_full = flat_size // _LANES                               # full 128-lane rows
    row_tile = min(_TARGET_ROW_TILE, (rows_full // _SUBLANES) * _SUBLANES)
    total_blocks = rows_full // row_tile                          # full tiles only
    main_rows = total_blocks * row_tile
    main_elems = main_rows * _LANES

    # Leading "parallel" axis sized to the TensorCore count (only if it divides
    # the block count cleanly -> no padding, no double-reads).
    num_splits = max(1, _num_tensorcores())
    while num_splits > 1 and total_blocks % num_splits != 0:
        num_splits -= 1
    steps = total_blocks // num_splits

    chunk_rows = _CHUNK_ROWS if row_tile % _CHUNK_ROWS == 0 else row_tile
    n_chunks = row_tile // chunk_rows
    acc_rows = 64 if chunk_rows % 64 == 0 else _SUBLANES

    # Lane-dense 2-D views of the kernel-covered prefix.
    if flat_size % _LANES == 0:
        yt2 = yt.reshape(-1, _LANES)      # pure reshape, no HBM copy
        yp2 = yp.reshape(-1, _LANES)
    else:
        # Unaligned size: slice only the 128-aligned prefix (still no
        # full-array zero-pad copy of both inputs).
        yt2 = yt[:main_elems].reshape(main_rows, _LANES)
        yp2 = yp[:main_elems].reshape(main_rows, _LANES)

    in_map = lambda c, i: (c * steps + i, 0)
    kernel = functools.partial(_mse_kernel, chunk_rows=chunk_rows,
                               n_chunks=n_chunks, acc_rows=acc_rows)

    partials = pl.pallas_call(
        kernel,
        out_shape=jax.ShapeDtypeStruct((num_splits * acc_rows, _LANES),
                                       jnp.float32),
        grid_spec=pltpu.PrefetchScalarGridSpec(
            num_scalar_prefetch=0,
            grid=(num_splits, steps),
            in_specs=[
                pl.BlockSpec((row_tile, _LANES), in_map),
                pl.BlockSpec((row_tile, _LANES), in_map),
            ],
            out_specs=pl.BlockSpec((acc_rows, _LANES), lambda c, i: (c, 0)),
        ),
        compiler_params=pltpu.CompilerParams(
            dimension_semantics=("parallel", "arbitrary"),
            vmem_limit_bytes=32 * 1024 * 1024,   # headroom; ~9 MiB actually used
        ),
    )(yt2, yp2)

    total = jnp.sum(partials, dtype=jnp.float32)

    # Remainder (< one tile) handled by a tiny wrapper-side reduction
    # instead of padding/copying the whole inputs.
    tail_elems = flat_size - main_elems
    if tail_elems:
        td = (yt[main_elems:].astype(jnp.float32)
              - yp[main_elems:].astype(jnp.float32))
        total = total + jnp.sum(td * td)

    # Divide by the TRUE element count (padding, if any, contributed zero).
    return total / jnp.float32(n)


if __name__ == "__main__":
    key = jax.random.PRNGKey(0)
    k1, k2 = jax.random.split(key)
    shape = (2, 4, 16, 16)  # NCHW, small synthetic example
    y_true = jax.random.normal(k1, shape, dtype=jnp.float32)
    y_pred = jax.random.normal(k2, shape, dtype=jnp.float32)

    result = mse_pallas(y_true, y_pred)
    jax.block_until_ready(result)

    ref = jnp.mean(jnp.square(y_true - y_pred))
    assert jnp.allclose(result, ref, rtol=1e-5, atol=1e-6), (result, ref)
    print("KERNEL_OK")
</pallas_src>

<mosaic_0001>
module attributes {stable_mosaic.version = 11 : i64} {
  func.func @_mse_kernel(%arg0: i32, %arg1: i32, %arg2: memref<16x128xf32, #tpu.memory_space<vmem>>, %arg3: memref<16x128xf32, #tpu.memory_space<vmem>>, %arg4: memref<8x128xf32, #tpu.memory_space<vmem>>) attributes {dimension_semantics = [#tpu.dimension_semantics<parallel>, #tpu.dimension_semantics<arbitrary>], iteration_bounds = array<i64: 1, 1>, scalar_prefetch = 0 : i64, scratch_operands = 0 : i64, tpu.core_type = #tpu.core_type<tc>, window_params = [{transform_indices = @transform_0, window_bounds = array<i64: 16, 128>}, {transform_indices = @transform_1, window_bounds = array<i64: 16, 128>}, {transform_indices = @transform_2, window_bounds = array<i64: 8, 128>}]} {
    %c0_i32 = arith.constant 0 : i32
    %0 = arith.cmpi eq, %arg1, %c0_i32 : i32
    %1 = arith.extui %0 : i1 to i32
    %c0_i32_0 = arith.constant 0 : i32
    %2 = arith.cmpi ne, %1, %c0_i32_0 : i32
    scf.if %2 {
      %cst_8 = arith.constant 0.000000e+00 : f32
      %18 = vector.broadcast %cst_8 : f32 to vector<8x128xf32>
      %c0_9 = arith.constant 0 : index
      %c0_10 = arith.constant 0 : index
      %19 = vector.load %arg4[%c0_9, %c0_10] : memref<8x128xf32, #tpu.memory_space<vmem>>, vector<8x128xf32>
      tpu.vector_store %arg4[%c0_9, %c0_10], %18 {strides = array<i32>} : memref<8x128xf32, #tpu.memory_space<vmem>>, vector<8x128xf32>,
    } else {
    }
    %cst = arith.constant 0.000000e+00 : f32
    %3 = vector.broadcast %cst : f32 to vector<8x128xf32>
    %c0_i32_1 = arith.constant 0 : i32
    %c16_i32 = arith.constant 16 : i32
    %4 = arith.muli %c0_i32_1, %c16_i32 : i32
    %5 = tpu.assume_multiple %4, 16 : i32
    %6 = arith.index_cast %5 : i32 to index
    %c0 = arith.constant 0 : index
    %7 = vector.load %arg2[%6, %c0] : memref<16x128xf32, #tpu.memory_space<vmem>>, vector<16x128xf32>
    %8 = arith.index_cast %5 : i32 to index
    %c0_2 = arith.constant 0 : index
    %9 = vector.load %arg3[%8, %c0_2] : memref<16x128xf32, #tpu.memory_space<vmem>>, vector<16x128xf32>
    %10 = arith.subf %7, %9 : vector<16x128xf32>
    %11 = arith.mulf %10, %10 : vector<16x128xf32>
    %12 = vector.shape_cast %11 : vector<16x128xf32> to vector<2x8x128xf32>
    %cst_3 = arith.constant dense<0.000000e+00> : vector<8x128xf32>
    %13 = vector.multi_reduction <add>, %12, %cst_3 [0] : vector<2x8x128xf32> to vector<8x128xf32>
    %14 = arith.addf %3, %13 : vector<8x128xf32>
    %c1_i32 = arith.constant 1 : i32
    %c0_4 = arith.constant 0 : index
    %c0_5 = arith.constant 0 : index
    %15 = vector.load %arg4[%c0_4, %c0_5] : memref<8x128xf32, #tpu.memory_space<vmem>>, vector<8x128xf32>
    %16 = arith.addf %15, %14 : vector<8x128xf32>
    %c0_6 = arith.constant 0 : index
    %c0_7 = arith.constant 0 : index
    %17 = vector.load %arg4[%c0_6, %c0_7] : memref<8x128xf32, #tpu.memory_space<vmem>>, vector<8x128xf32>
    tpu.vector_store %arg4[%c0_6, %c0_7], %16 {strides = array<i32>} : memref<8x128xf32, #tpu.memory_space<vmem>>, vector<8x128xf32>,
    return
  }
  func.func @transform_0(%arg0: i32, %arg1: i32) -> (i32, i32) {
    %c1_i32 = arith.constant 1 : i32
    %0 = arith.muli %arg0, %c1_i32 : i32
    %1 = arith.addi %0, %arg1 : i32
    %c0_i32 = arith.constant 0 : i32
    %c0_i32_0 = arith.constant 0 : i32
    return %1, %c0_i32 : i32, i32
  }
  func.func @transform_1(%arg0: i32, %arg1: i32) -> (i32, i32) {
    %c1_i32 = arith.constant 1 : i32
    %0 = arith.muli %arg0, %c1_i32 : i32
    %1 = arith.addi %0, %arg1 : i32
    %c0_i32 = arith.constant 0 : i32
    %c0_i32_0 = arith.constant 0 : i32
    return %1, %c0_i32 : i32, i32
  }
  func.func @transform_2(%arg0: i32, %arg1: i32) -> (i32, i32) {
    %c0_i32 = arith.constant 0 : i32
    %c0_i32_0 = arith.constant 0 : i32
    return %arg0, %c0_i32 : i32, i32
  }
}

</mosaic_0001>

<llo_original>
// kernel: tpu_custom_call.1
$region0: #{tpu_custom_call.1}
  #allocation0 [shape = 'u32[]', space=smem, size = 0x4, offset = 0x4, fixed_abs, tag = 'smem constant byte address 0x4 - core index']
  #allocation1 [shape = 'u32[144,128]{1,0:T(1,128)}', space=vmem, size = 0x12000, scoped, tag = 'internal scratch']
  %s0 = inlined_call_operand.hbm [shape: f32[16,128], index: 0, kind: input, shape index: {}]
  %s1 = inlined_call_operand.hbm [shape: f32[16,128], index: 1, kind: input, shape index: {}]
  %s2 = inlined_call_operand.hbm [shape: f32[8,128], index: 2, kind: output, shape index: {}]
  %s3 = sld [smem:[#allocation0]]
  $region30: #{tpu_custom_call.1} parent=0
    _
  %s5 = ssub.s32 1, %s3
  %s6 = scalar_select 0, %s5, %s3
  $region1: #{tpu_custom_call.1} parent=0
    #allocation2 [shape = 'u8[8192]{0}', space=vmem, size = 0x2000, scoped, tag = 'input window, operand 0, single buffered']
    #allocation3 [shape = 's32[1]{0}', space=sflag, size = 0x4, scoped, tag = 'scoped memory for tpu_custom_call.1']
    #allocation4 [shape = 's32[1]{0}', space=sflag, size = 0x4, scoped, tag = 'scoped memory for tpu_custom_call.1']
    #allocation5 [shape = 'u8[8192]{0}', space=vmem, size = 0x2000, scoped, tag = 'input window, operand 1, single buffered']
    #allocation6 [shape = 's32[1]{0}', space=sflag, size = 0x4, scoped, tag = 'scoped memory for tpu_custom_call.1']
    #allocation7 [shape = 'u8[4096]{0}', space=vmem, size = 0x1000, scoped, tag = 'output window, operand 0, single buffered']
    %7 = vsyncpa [#allocation3], 0
    %8 = vsyncpa [#allocation6], 0
    %9 = vsyncpa [#allocation4], 0
    // Predicated region
    $region2: #{tpu_custom_call.1} parent=1 // pred_check
      _
    $region3: #{tpu_custom_call.1} parent=1 // pred_check_branch
      %11 = sbr.rel (0) target = $region5
    $region4: #{tpu_custom_call.1} parent=1 // pred_region
      %s12 = sadd.s32 0, 0
      %s13 = smul.u32 2, %s12
      %s15 = ssub.s32 256, 256
      %16 = vsyncadd [#allocation3], %s15
      %s17 = smul.addr %s13, 128
      %s18 = scalar_lea.hbm %s0, %s17
      %s19 = sshll.u32 [#allocation2], 4
      %s20 = int_to_ptr.vmem [resolvable:$true] %s19
      %25 = dma.hbm_to_vmem [thread:$0]  %s18, 256, %s20, [#allocation3], 128, 128, 8
    $region5: #{tpu_custom_call.1} parent=1 // pred_fallthru
      _
    // Predicated region
    $region6: #{tpu_custom_call.1} parent=1 // pred_check
      _
    $region7: #{tpu_custom_call.1} parent=1 // pred_check_branch
      %27 = sbr.rel (0) target = $region9
    $region8: #{tpu_custom_call.1} parent=1 // pred_region
      %s28 = sadd.s32 0, 0
      %s29 = smul.u32 2, %s28
      %s31 = ssub.s32 256, 256
      %32 = vsyncadd [#allocation6], %s31
      %s33 = smul.addr %s29, 128
      %s34 = scalar_lea.hbm %s1, %s33
      %s35 = sshll.u32 [#allocation5], 4
      %s36 = int_to_ptr.vmem [resolvable:$true] %s35
      %41 = dma.hbm_to_vmem [thread:$0]  %s34, 256, %s36, [#allocation6], 128, 128, 8
    $region9: #{tpu_custom_call.1} parent=1 // pred_fallthru
      _
    // Predicated region
    $region10: #{tpu_custom_call.1} parent=1 // pred_check
      _
    $region11: #{tpu_custom_call.1} parent=1 // pred_check_branch
      %43 = sbr.rel (0) target = $region13
    $region12: #{tpu_custom_call.1} parent=1 // pred_region
      %44 = dma.done [#allocation3], 256
    $region13: #{tpu_custom_call.1} parent=1 // pred_fallthru
      _
    // Predicated region
    $region14: #{tpu_custom_call.1} parent=1 // pred_check
      _
    $region15: #{tpu_custom_call.1} parent=1 // pred_check_branch
      %46 = sbr.rel (0) target = $region17
    $region16: #{tpu_custom_call.1} parent=1 // pred_region
      %47 = dma.done [#allocation6], 256
    $region17: #{tpu_custom_call.1} parent=1 // pred_fallthru
      _
    %s48 = sadd.s32 0, 0
    %s49 = smul.u32 2, %s48
    %s50 = sadd.s32 0, 0
    %s51 = smul.u32 2, %s50
    %p52 = scmp.eq.s32.totalorder 0, 0
    // Predicated region
    $region18: #{tpu_custom_call.1} parent=1 // pred_check
      %p53 = pneg %p52
    $region19: #{tpu_custom_call.1} parent=1 // pred_check_branch
      %55 = sbr.rel (%p53) target = $region21
    $region20: #{tpu_custom_call.1} parent=1 // pred_region
      %56 = vst [vmem:[#allocation7] sm:$0xff] 0.0
    $region21: #{tpu_custom_call.1} parent=1 // pred_fallthru
      _
    %v57 = vld [vmem:[#allocation2] sm:$0xff]
    %v58 = vld [vmem:[#allocation2 + $0x8] sm:$0xff]
    %v59 = vld [vmem:[#allocation5] sm:$0xff]
    %v60 = vld [vmem:[#allocation5 + $0x8] sm:$0xff]
    %v61 = vsub.f32 %v57, %v59
    %v62 = vsub.f32 %v58, %v60
    %v63 = vmul.f32 %v61, %v61
    %v64 = vmul.f32 %v62, %v62
    %v65 = vadd.f32 %v63, %v64
    %v66 = vadd.f32 %v65, 0.0
    %v67 = vld [vmem:[#allocation7] sm:$0xff]
    %v68 = vadd.f32 %v67, %v66
    %69 = vst [vmem:[#allocation7] sm:$0xff] %v68
    // Predicated region
    $region22: #{tpu_custom_call.1} parent=1 // pred_check
      _
    $region23: #{tpu_custom_call.1} parent=1 // pred_check_branch
      %71 = sbr.rel (0) target = $region25
    $region24: #{tpu_custom_call.1} parent=1 // pred_region
      %s73 = ssub.s32 128, 128
      %74 = vsyncadd [#allocation4], %s73
      %s76 = sshll.u32 [#allocation7], 4
      %s77 = int_to_ptr.vmem [resolvable:$true] %s76
      %79 = dma.vmem_to_hbm [thread:$0]  %s77, 128, %s2, [#allocation4]
    $region25: #{tpu_custom_call.1} parent=1 // pred_fallthru
      _
    // Predicated region
    $region26: #{tpu_custom_call.1} parent=1 // pred_check
      _
    $region27: #{tpu_custom_call.1} parent=1 // pred_check_branch
      %81 = sbr.rel (0) target = $region29
    $region28: #{tpu_custom_call.1} parent=1 // pred_region
      %82 = dma.done [#allocation4], 128
    $region29: #{tpu_custom_call.1} parent=1 // pred_fallthru
      _
    %83 = vsyncpa [#allocation3], 1
    %84 = vsyncpa [#allocation6], 1
    %85 = vsyncpa [#allocation4], 1

</llo_original>
